<compile_context>
chip_gen: v5e
topology: v5e:2x2
jax: 0.10.0
libtpu: 0.0.40
codegen_flags: <defaults>
</compile_context>

<pallas_src>
import functools

import jax
import jax.numpy as jnp
from jax.experimental import pallas as pl
from jax.experimental.pallas import tpu as pltpu

D_IN, D_H, D_LAT = 100, 75, 25  # 100 -> 75 -> 25 -> 75 -> 100


def _affine_kernel(x_ref, wc_ref, bc_ref, out_ref):
    # Single fused affine map: out = x @ W_c + b_c (f32 accumulation,
    # HIGHEST precision to match the f32 reference).
    acc = jnp.dot(
        x_ref[...],
        wc_ref[...],
        preferred_element_type=jnp.float32,
        precision=jax.lax.Precision.HIGHEST,
    )
    out_ref[...] = (acc + bc_ref[...]).astype(out_ref.dtype)


def fold_params(params):
    """Fold the 4 bias-ed linear layers into one affine map (W_c, b_c).

    Call once per parameter set and reuse (wc, bc) across forward calls.
    """
    hp = jax.lax.Precision.HIGHEST
    wc = jnp.dot(params["w1"], params["w2"], precision=hp)
    wc = jnp.dot(wc, params["w3"], precision=hp)
    wc = jnp.dot(wc, params["w4"], precision=hp)
    bc = jnp.dot(params["b1"], params["w2"], precision=hp) + params["b2"]
    bc = jnp.dot(bc, params["w3"], precision=hp) + params["b3"]
    bc = jnp.dot(bc, params["w4"], precision=hp) + params["b4"]
    return wc, bc


def _pick_tile(B, block_rows):
    """Batch tile: multiple of 8 (sublane), <= block_rows, and when B >= 16
    capped at ~B/2 so the grid has >= 2 steps (both v7x TensorCores busy)."""
    b8 = ((B + 7) // 8) * 8
    if B >= 16:
        half = ((-(-B // 2)) + 7) // 8 * 8   # ceil(B/2) rounded up to 8
        tb = min(block_rows, half)
    else:
        tb = min(block_rows, b8)
    return max(8, (tb // 8) * 8)


@functools.partial(jax.jit, static_argnames=("block_rows",))
def autoencoder_x_folded(x, wc, bc, *, block_rows=8192):
    """x: (B, 100) f32. wc: (100, 100), bc: (1, 100) from fold_params."""
    B, F = x.shape
    assert F == D_IN, f"expected {D_IN} input features, got {F}"

    tb = _pick_tile(B, block_rows)
    grid = (pl.cdiv(B, tb),)   # ragged trailing block handled by Pallas

    cost = pl.CostEstimate(
        flops=2 * B * F * F,
        transcendentals=0,
        bytes_accessed=(2 * B * F + F * F + F) * 4,
    )

    return pl.pallas_call(
        _affine_kernel,
        out_shape=jax.ShapeDtypeStruct((B, F), jnp.float32),
        grid=grid,
        in_specs=[
            pl.BlockSpec((tb, F), lambda i: (i, 0)),   # x: tiled over batch
            pl.BlockSpec((F, F), lambda i: (0, 0)),    # folded weight, VMEM-resident
            pl.BlockSpec((1, F), lambda i: (0, 0)),    # folded bias, VMEM-resident
        ],
        out_specs=pl.BlockSpec((tb, F), lambda i: (i, 0)),
        compiler_params=pltpu.CompilerParams(
            dimension_semantics=("parallel",),         # megacore sharding on v7x
            vmem_limit_bytes=32 * 1024 * 1024,         # explicit, safe on v5e/v6e/v7x
        ),
        cost_estimate=cost,
    )(x, wc, bc)


def autoencoder_x(x, params, *, block_rows=8192):
    """Convenience path: folds params then applies the kernel (all under jit
    via autoencoder_x_folded). For steady-state use, call fold_params once
    and reuse (wc, bc) with autoencoder_x_folded."""
    wc, bc = fold_params(params)
    return autoencoder_x_folded(x, wc, bc, block_rows=block_rows)


def init_params(key):
    """Deterministic init matching nn.Linear shapes; W stored as (in, out) = W_pt.T."""
    dims = [(D_IN, D_H), (D_H, D_LAT), (D_LAT, D_H), (D_H, D_IN)]
    params = {}
    for i, (fin, fout) in enumerate(dims, start=1):
        key, kw, kb = jax.random.split(key, 3)
        bound = 1.0 / jnp.sqrt(fin)
        params[f"w{i}"] = jax.random.uniform(kw, (fin, fout), jnp.float32,
                                             minval=-bound, maxval=bound)
        params[f"b{i}"] = jax.random.uniform(kb, (1, fout), jnp.float32,
                                             minval=-bound, maxval=bound)
    return params


def _reference(x, p):
    """Unfolded 4-layer reference (matches PyTorch forward) in full f32 precision."""
    hp = jax.lax.Precision.HIGHEST
    h = jnp.dot(x, p["w1"], precision=hp) + p["b1"]
    h = jnp.dot(h, p["w2"], precision=hp) + p["b2"]
    h = jnp.dot(h, p["w3"], precision=hp) + p["b3"]
    return jnp.dot(h, p["w4"], precision=hp) + p["b4"]


if __name__ == "__main__":
    key = jax.random.PRNGKey(0)
    kp, kx, kx2 = jax.random.split(key, 3)
    params = init_params(kp)
    wc, bc = fold_params(params)   # fold once, reuse across calls

    # Small shape consistent with the module (batch=8, features=100).
    B = 8
    x = jax.random.normal(kx, (B, D_IN), jnp.float32)
    out = jax.block_until_ready(autoencoder_x_folded(x, wc, bc))
    ref = _reference(x, params)
    assert out.shape == (B, D_IN)
    assert jnp.allclose(out, ref, atol=1e-3, rtol=1e-3), "mismatch vs JAX reference"

    # Exercise the multi-tile + ragged trailing-block path (no host-side pad/slice).
    B2 = 130
    x2 = jax.random.normal(kx2, (B2, D_IN), jnp.float32)
    out2 = jax.block_until_ready(autoencoder_x_folded(x2, wc, bc, block_rows=64))
    ref2 = _reference(x2, params)
    assert out2.shape == (B2, D_IN)
    assert jnp.allclose(out2, ref2, atol=1e-3, rtol=1e-3), "mismatch (ragged path)"

    # Convenience (fold-inside) path also works.
    out3 = jax.block_until_ready(autoencoder_x(x, params))
    assert jnp.allclose(out3, ref, atol=1e-3, rtol=1e-3), "mismatch (convenience path)"

    print("KERNEL_OK")
</pallas_src>

<mosaic_0001>
module attributes {stable_mosaic.version = 11 : i64} {
  func.func @_affine_kernel(%arg0: i32, %arg1: memref<8x100xf32, #tpu.memory_space<vmem>>, %arg2: memref<100x100xf32, #tpu.memory_space<vmem>>, %arg3: memref<1x100xf32, #tpu.memory_space<vmem>>, %arg4: memref<8x100xf32, #tpu.memory_space<vmem>>) attributes {dimension_semantics = [#tpu.dimension_semantics<parallel>], iteration_bounds = array<i64: 1>, scalar_prefetch = 0 : i64, scratch_operands = 0 : i64, tpu.core_type = #tpu.core_type<tc>, window_params = [{transform_indices = @transform_0, window_bounds = array<i64: 8, 100>}, {pipeline_mode = #tpu.pipeline_mode<synchronous>, transform_indices = @transform_1, window_bounds = array<i64: 100, 100>}, {pipeline_mode = #tpu.pipeline_mode<synchronous>, transform_indices = @transform_2, window_bounds = array<i64: 1, 100>}, {transform_indices = @transform_3, window_bounds = array<i64: 8, 100>}]} {
    %c0 = arith.constant 0 : index
    %c0_0 = arith.constant 0 : index
    %0 = vector.load %arg1[%c0, %c0_0] : memref<8x100xf32, #tpu.memory_space<vmem>>, vector<8x100xf32>
    %c0_1 = arith.constant 0 : index
    %c0_2 = arith.constant 0 : index
    %1 = vector.load %arg2[%c0_1, %c0_2] : memref<100x100xf32, #tpu.memory_space<vmem>>, vector<100x100xf32>
    %cst = arith.constant dense<0.000000e+00> : vector<8x100xf32>
    %2 = tpu.matmul %0, %1, %cst {dimension_numbers = #tpu.dot_dimension_numbers<[1], [0], [0], [1], [0, 0, 1, 1], [], []>, precision = #tpu.contract_precision<fp32>} : vector<8x100xf32>, vector<100x100xf32>, vector<8x100xf32> -> vector<8x100xf32>
    %c0_3 = arith.constant 0 : index
    %c0_4 = arith.constant 0 : index
    %3 = vector.load %arg3[%c0_3, %c0_4] : memref<1x100xf32, #tpu.memory_space<vmem>>, vector<1x100xf32>
    %4 = vector.broadcast %3 : vector<1x100xf32> to vector<8x100xf32>
    %5 = arith.addf %2, %4 : vector<8x100xf32>
    %c0_5 = arith.constant 0 : index
    %c0_6 = arith.constant 0 : index
    %6 = vector.load %arg4[%c0_5, %c0_6] : memref<8x100xf32, #tpu.memory_space<vmem>>, vector<8x100xf32>
    tpu.vector_store %arg4[%c0_5, %c0_6], %5 {strides = array<i32>} : memref<8x100xf32, #tpu.memory_space<vmem>>, vector<8x100xf32>,
    return
  }
  func.func @transform_0(%arg0: i32) -> (i32, i32) {
    %c0_i32 = arith.constant 0 : i32
    %c0_i32_0 = arith.constant 0 : i32
    return %arg0, %c0_i32 : i32, i32
  }
  func.func @transform_1(%arg0: i32) -> (i32, i32) {
    %c0_i32 = arith.constant 0 : i32
    %c0_i32_0 = arith.constant 0 : i32
    %c0_i32_1 = arith.constant 0 : i32
    return %c0_i32, %c0_i32_0 : i32, i32
  }
  func.func @transform_2(%arg0: i32) -> (i32, i32) {
    %c0_i32 = arith.constant 0 : i32
    %c0_i32_0 = arith.constant 0 : i32
    %c0_i32_1 = arith.constant 0 : i32
    return %c0_i32, %c0_i32_0 : i32, i32
  }
  func.func @transform_3(%arg0: i32) -> (i32, i32) {
    %c0_i32 = arith.constant 0 : i32
    %c0_i32_0 = arith.constant 0 : i32
    return %arg0, %c0_i32 : i32, i32
  }
}

</mosaic_0001>

<llo_original>
// kernel: autoencoder_x_folded.1
$region0: #{autoencoder_x_folded.1}
  #allocation0 [shape = 'u32[]', space=smem, size = 0x4, offset = 0x4, fixed_abs, tag = 'smem constant byte address 0x4 - core index']
  #allocation1 [shape = 'u32[72,128]{1,0:T(1,128)}', space=vmem, size = 0x9000, scoped, tag = 'internal scratch']
  %s0 = inlined_call_operand.hbm [shape: f32[8,100], index: 0, kind: input, shape index: {}]
  %s1 = inlined_call_operand.hbm [shape: f32[100,100], index: 1, kind: input, shape index: {}]
  %s2 = inlined_call_operand.vmem [shape: f32[1,100], index: 2, kind: input, shape index: {}]
  %s3 = inlined_call_operand.hbm [shape: f32[8,100], index: 3, kind: output, shape index: {}]
  %s4 = sld [smem:[#allocation0]]
  $region30: #{autoencoder_x_folded.1} parent=0
    _
  %s6 = ssub.s32 1, %s4
  %s7 = scalar_select 0, %s6, %s4
  $region1: #{autoencoder_x_folded.1} parent=0
    #allocation2 [shape = 'u8[4096]{0}', space=vmem, size = 0x1000, scoped, tag = 'input window, operand 0, single buffered']
    #allocation3 [shape = 's32[1]{0}', space=sflag, size = 0x4, scoped, tag = 'scoped memory for autoencoder_x_folded.1']
    #allocation4 [shape = 's32[1]{0}', space=sflag, size = 0x4, scoped, tag = 'scoped memory for autoencoder_x_folded.1']
    #allocation5 [shape = 'u8[53248]{0}', space=vmem, size = 0xd000, scoped, tag = 'input window, operand 1, single buffered']
    #allocation6 [shape = 's32[1]{0}', space=sflag, size = 0x4, scoped, tag = 'scoped memory for autoencoder_x_folded.1']
    #allocation7 [shape = 'u8[4096]{0}', space=vmem, size = 0x1000, scoped, tag = 'output window, operand 0, single buffered']
    %8 = vsyncpa [#allocation3], 0
    %9 = vsyncpa [#allocation6], 0
    %10 = vsyncpa [#allocation4], 0
    // Predicated region
    $region2: #{autoencoder_x_folded.1} parent=1 // pred_check
      _
    $region3: #{autoencoder_x_folded.1} parent=1 // pred_check_branch
      %12 = sbr.rel (0) target = $region5
    $region4: #{autoencoder_x_folded.1} parent=1 // pred_region
      %14 = vsyncadd [#allocation3], 0
      %s16 = sshll.u32 %s0, 4
      %s17 = int_to_ptr.hbm [resolvable:$true] %s16
      %s18 = sshll.u32 [#allocation2], 4
      %s19 = int_to_ptr.vmem [resolvable:$true] %s18
      %21 = dma.hbm_to_vmem [thread:$0]  %s17, 128, %s19, [#allocation3]
    $region5: #{autoencoder_x_folded.1} parent=1 // pred_fallthru
      _
    // Predicated region
    $region6: #{autoencoder_x_folded.1} parent=1 // pred_check
      _
    $region7: #{autoencoder_x_folded.1} parent=1 // pred_check_branch
      %23 = sbr.rel (0) target = $region9
    $region8: #{autoencoder_x_folded.1} parent=1 // pred_region
      %25 = vsyncadd [#allocation6], 0
      %s26 = sshll.u32 %s1, 4
      %s27 = int_to_ptr.hbm [resolvable:$true] %s26
      %s28 = sshll.u32 [#allocation5], 4
      %s29 = int_to_ptr.vmem [resolvable:$true] %s28
      %34 = dma.hbm_to_vmem [thread:$0]  %s27, 1664, %s29, [#allocation6], 128, 128, 8
    $region9: #{autoencoder_x_folded.1} parent=1 // pred_fallthru
      _
    // Predicated region
    $region10: #{autoencoder_x_folded.1} parent=1 // pred_check
      _
    $region11: #{autoencoder_x_folded.1} parent=1 // pred_check_branch
      %36 = sbr.rel (0) target = $region13
    $region12: #{autoencoder_x_folded.1} parent=1 // pred_region
      _
    $region13: #{autoencoder_x_folded.1} parent=1 // pred_fallthru
      _
    // Predicated region
    $region14: #{autoencoder_x_folded.1} parent=1 // pred_check
      _
    $region15: #{autoencoder_x_folded.1} parent=1 // pred_check_branch
      %38 = sbr.rel (0) target = $region17
    $region16: #{autoencoder_x_folded.1} parent=1 // pred_region
      %40 = dma.done [#allocation3], 128
    $region17: #{autoencoder_x_folded.1} parent=1 // pred_fallthru
      _
    // Predicated region
    $region18: #{autoencoder_x_folded.1} parent=1 // pred_check
      _
    $region19: #{autoencoder_x_folded.1} parent=1 // pred_check_branch
      %42 = sbr.rel (0) target = $region21
    $region20: #{autoencoder_x_folded.1} parent=1 // pred_region
      %44 = dma.done [#allocation6], 1664
    $region21: #{autoencoder_x_folded.1} parent=1 // pred_fallthru
      _
    %v45 = vld [vmem:[#allocation2] sm:$0xff]
    %v46 = vld [vmem:[#allocation5] sm:$0xff]
    %v47 = vld [vmem:[#allocation5 + $0x8] sm:$0xff]
    %v48 = vld [vmem:[#allocation5 + $0x10] sm:$0xff]
    %v49 = vld [vmem:[#allocation5 + $0x18] sm:$0xff]
    %v50 = vld [vmem:[#allocation5 + $0x20] sm:$0xff]
    %v51 = vld [vmem:[#allocation5 + $0x28] sm:$0xff]
    %v52 = vld [vmem:[#allocation5 + $0x30] sm:$0xff]
    %v53 = vld [vmem:[#allocation5 + $0x38] sm:$0xff]
    %v54 = vld [vmem:[#allocation5 + $0x40] sm:$0xff]
    %v55 = vld [vmem:[#allocation5 + $0x48] sm:$0xff]
    %v56 = vld [vmem:[#allocation5 + $0x50] sm:$0xff]
    %v57 = vld [vmem:[#allocation5 + $0x58] sm:$0xff]
    %v58 = vld [vmem:[#allocation5 + $0x60] sm:$0xf]
    %v59 = vld [vmem:[%s2] sm:$0x1]
    %v61 = vperm.slane %v59, 0
    %vm63 = vcmask 818176
    %v65 = vsel %vm63, %v45, 0
    %vm67 = vcmask 1043456
    %v69 = vsel %vm67, %v58, 0
    %71 = vmatpush.msra.mxu0 0.0
    %72 = vmatpush.msra.mxu0 0.0
    %73 = vmatpush.msra.mxu0 0.0
    %v74 = vand.u32 %v69, 4294901760
    %75 = vmatpush.msra.mxu0 %v74
    %v76 = vand.u32 %v57, 4294901760
    %77 = vmatpush.msra.mxu0 %v76
    %v78 = vand.u32 %v56, 4294901760
    %79 = vmatpush.msra.mxu0 %v78
    %v80 = vand.u32 %v55, 4294901760
    %81 = vmatpush.msra.mxu0 %v80
    %v82 = vand.u32 %v54, 4294901760
    %83 = vmatpush.msra.mxu0 %v82
    %v84 = vand.u32 %v53, 4294901760
    %85 = vmatpush.msra.mxu0 %v84
    %v86 = vand.u32 %v52, 4294901760
    %87 = vmatpush.msra.mxu0 %v86
    %v88 = vand.u32 %v51, 4294901760
    %89 = vmatpush.msra.mxu0 %v88
    %v90 = vand.u32 %v50, 4294901760
    %91 = vmatpush.msra.mxu0 %v90
    %v92 = vand.u32 %v49, 4294901760
    %93 = vmatpush.msra.mxu0 %v92
    %v94 = vand.u32 %v48, 4294901760
    %95 = vmatpush.msra.mxu0 %v94
    %v96 = vand.u32 %v47, 4294901760
    %97 = vmatpush.msra.mxu0 %v96
    %v98 = vand.u32 %v46, 4294901760
    %99 = vmatpush.msra.mxu0 %v98
    %v100 = vand.u32 %v65, 4294901760
    %v101 = vsub.f32 %v65, %v100
    %v102 = vand.u32 %v101, 4294901760
    %v103 = vsub.f32 %v101, %v102
    %v104 = vand.u32 %v103, 4294901760
    %105 = vmatmul.f32.gmra.mxu0 %v104
    %v106 = vpop.f32.mrf.mxu0
    %v107 = vadd.f32 %v61, %v106
    %108 = vdwg.mxu0
    %109 = vmatpush.msra.mxu0 0.0
    %110 = vmatpush.msra.mxu0 0.0
    %111 = vmatpush.msra.mxu0 0.0
    %v112 = vand.u32 %v69, 4294901760
    %v113 = vsub.f32 %v69, %v112
    %v114 = vand.u32 %v113, 4294901760
    %v115 = vsub.f32 %v113, %v114
    %v116 = vand.u32 %v115, 4294901760
    %117 = vmatpush.msra.mxu0 %v116
    %v118 = vand.u32 %v57, 4294901760
    %v119 = vsub.f32 %v57, %v118
    %v120 = vand.u32 %v119, 4294901760
    %v121 = vsub.f32 %v119, %v120
    %v122 = vand.u32 %v121, 4294901760
    %123 = vmatpush.msra.mxu0 %v122
    %v124 = vand.u32 %v56, 4294901760
    %v125 = vsub.f32 %v56, %v124
    %v126 = vand.u32 %v125, 4294901760
    %v127 = vsub.f32 %v125, %v126
    %v128 = vand.u32 %v127, 4294901760
    %129 = vmatpush.msra.mxu0 %v128
    %v130 = vand.u32 %v55, 4294901760
    %v131 = vsub.f32 %v55, %v130
    %v132 = vand.u32 %v131, 4294901760
    %v133 = vsub.f32 %v131, %v132
    %v134 = vand.u32 %v133, 4294901760
    %135 = vmatpush.msra.mxu0 %v134
    %v136 = vand.u32 %v54, 4294901760
    %v137 = vsub.f32 %v54, %v136
    %v138 = vand.u32 %v137, 4294901760
    %v139 = vsub.f32 %v137, %v138
    %v140 = vand.u32 %v139, 4294901760
    %141 = vmatpush.msra.mxu0 %v140
    %v142 = vand.u32 %v53, 4294901760
    %v143 = vsub.f32 %v53, %v142
    %v144 = vand.u32 %v143, 4294901760
    %v145 = vsub.f32 %v143, %v144
    %v146 = vand.u32 %v145, 4294901760
    %147 = vmatpush.msra.mxu0 %v146
    %v148 = vand.u32 %v52, 4294901760
    %v149 = vsub.f32 %v52, %v148
    %v150 = vand.u32 %v149, 4294901760
    %v151 = vsub.f32 %v149, %v150
    %v152 = vand.u32 %v151, 4294901760
    %153 = vmatpush.msra.mxu0 %v152
    %v154 = vand.u32 %v51, 4294901760
    %v155 = vsub.f32 %v51, %v154
    %v156 = vand.u32 %v155, 4294901760
    %v157 = vsub.f32 %v155, %v156
    %v158 = vand.u32 %v157, 4294901760
    %159 = vmatpush.msra.mxu0 %v158
    %v160 = vand.u32 %v50, 4294901760
    %v161 = vsub.f32 %v50, %v160
    %v162 = vand.u32 %v161, 4294901760
    %v163 = vsub.f32 %v161, %v162
    %v164 = vand.u32 %v163, 4294901760
    %165 = vmatpush.msra.mxu0 %v164
    %v166 = vand.u32 %v49, 4294901760
    %v167 = vsub.f32 %v49, %v166
    %v168 = vand.u32 %v167, 4294901760
    %v169 = vsub.f32 %v167, %v168
    %v170 = vand.u32 %v169, 4294901760
    %171 = vmatpush.msra.mxu0 %v170
    %v172 = vand.u32 %v48, 4294901760
    %v173 = vsub.f32 %v48, %v172
    %v174 = vand.u32 %v173, 4294901760
    %v175 = vsub.f32 %v173, %v174
    %v176 = vand.u32 %v175, 4294901760
    %177 = vmatpush.msra.mxu0 %v176
    %v178 = vand.u32 %v47, 4294901760
    %v179 = vsub.f32 %v47, %v178
    %v180 = vand.u32 %v179, 4294901760
    %v181 = vsub.f32 %v179, %v180
    %v182 = vand.u32 %v181, 4294901760
    %183 = vmatpush.msra.mxu0 %v182
    %v184 = vand.u32 %v46, 4294901760
    %v185 = vsub.f32 %v46, %v184
    %v186 = vand.u32 %v185, 4294901760
    %v187 = vsub.f32 %v185, %v186
    %v188 = vand.u32 %v187, 4294901760
    %189 = vmatpush.msra.mxu0 %v188
    %v190 = vand.u32 %v65, 4294901760
    %191 = vmatmul.f32.gmra.mxu0 %v190
    %v192 = vpop.f32.mrf.mxu0
    %v193 = vadd.f32 %v107, %v192
    %194 = vdwg.mxu0
    %195 = vmatpush.msra.mxu0 0.0
    %196 = vmatpush.msra.mxu0 0.0
    %197 = vmatpush.msra.mxu0 0.0
    %v198 = vand.u32 %v69, 4294901760
    %v199 = vsub.f32 %v69, %v198
    %200 = vmatpush.msra.mxu0 %v199
    %v201 = vand.u32 %v57, 4294901760
    %v202 = vsub.f32 %v57, %v201
    %203 = vmatpush.msra.mxu0 %v202
    %v204 = vand.u32 %v56, 4294901760
    %v205 = vsub.f32 %v56, %v204
    %206 = vmatpush.msra.mxu0 %v205
    %v207 = vand.u32 %v55, 4294901760
    %v208 = vsub.f32 %v55, %v207
    %209 = vmatpush.msra.mxu0 %v208
    %v210 = vand.u32 %v54, 4294901760
    %v211 = vsub.f32 %v54, %v210
    %212 = vmatpush.msra.mxu0 %v211
    %v213 = vand.u32 %v53, 4294901760
    %v214 = vsub.f32 %v53, %v213
    %215 = vmatpush.msra.mxu0 %v214
    %v216 = vand.u32 %v52, 4294901760
    %v217 = vsub.f32 %v52, %v216
    %218 = vmatpush.msra.mxu0 %v217
    %v219 = vand.u32 %v51, 4294901760
    %v220 = vsub.f32 %v51, %v219
    %221 = vmatpush.msra.mxu0 %v220
    %v222 = vand.u32 %v50, 4294901760
    %v223 = vsub.f32 %v50, %v222
    %224 = vmatpush.msra.mxu0 %v223
    %v225 = vand.u32 %v49, 4294901760
    %v226 = vsub.f32 %v49, %v225
    %227 = vmatpush.msra.mxu0 %v226
    %v228 = vand.u32 %v48, 4294901760
    %v229 = vsub.f32 %v48, %v228
    %230 = vmatpush.msra.mxu0 %v229
    %v231 = vand.u32 %v47, 4294901760
    %v232 = vsub.f32 %v47, %v231
    %233 = vmatpush.msra.mxu0 %v232
    %v234 = vand.u32 %v46, 4294901760
    %v235 = vsub.f32 %v46, %v234
    %236 = vmatpush.msra.mxu0 %v235
    %v237 = vand.u32 %v65, 4294901760
    %v238 = vsub.f32 %v65, %v237
    %239 = vmatmul.f32.gmra.mxu0 %v238
    %v240 = vpop.f32.mrf.mxu0
    %v241 = vadd.f32 %v193, %v240
    %242 = vdwg.mxu0
    %243 = vmatpush.msra.mxu0 0.0
    %244 = vmatpush.msra.mxu0 0.0
    %245 = vmatpush.msra.mxu0 0.0
    %v246 = vand.u32 %v69, 4294901760
    %247 = vmatpush.msra.mxu0 %v246
    %v248 = vand.u32 %v57, 4294901760
    %249 = vmatpush.msra.mxu0 %v248
    %v250 = vand.u32 %v56, 4294901760
    %251 = vmatpush.msra.mxu0 %v250
    %v252 = vand.u32 %v55, 4294901760
    %253 = vmatpush.msra.mxu0 %v252
    %v254 = vand.u32 %v54, 4294901760
    %255 = vmatpush.msra.mxu0 %v254
    %v256 = vand.u32 %v53, 4294901760
    %257 = vmatpush.msra.mxu0 %v256
    %v258 = vand.u32 %v52, 4294901760
    %259 = vmatpush.msra.mxu0 %v258
    %v260 = vand.u32 %v51, 4294901760
    %261 = vmatpush.msra.mxu0 %v260
    %v262 = vand.u32 %v50, 4294901760
    %263 = vmatpush.msra.mxu0 %v262
    %v264 = vand.u32 %v49, 4294901760
    %265 = vmatpush.msra.mxu0 %v264
    %v266 = vand.u32 %v48, 4294901760
    %267 = vmatpush.msra.mxu0 %v266
    %v268 = vand.u32 %v47, 4294901760
    %269 = vmatpush.msra.mxu0 %v268
    %v270 = vand.u32 %v46, 4294901760
    %271 = vmatpush.msra.mxu0 %v270
    %v272 = vand.u32 %v65, 4294901760
    %v273 = vsub.f32 %v65, %v272
    %v274 = vand.u32 %v273, 4294901760
    %275 = vmatmul.f32.gmra.mxu0 %v274
    %v276 = vpop.f32.mrf.mxu0
    %v277 = vadd.f32 %v241, %v276
    %278 = vdwg.mxu0
    %279 = vmatpush.msra.mxu0 0.0
    %280 = vmatpush.msra.mxu0 0.0
    %281 = vmatpush.msra.mxu0 0.0
    %v282 = vand.u32 %v69, 4294901760
    %v283 = vsub.f32 %v69, %v282
    %v284 = vand.u32 %v283, 4294901760
    %285 = vmatpush.msra.mxu0 %v284
    %v286 = vand.u32 %v57, 4294901760
    %v287 = vsub.f32 %v57, %v286
    %v288 = vand.u32 %v287, 4294901760
    %289 = vmatpush.msra.mxu0 %v288
    %v290 = vand.u32 %v56, 4294901760
    %v291 = vsub.f32 %v56, %v290
    %v292 = vand.u32 %v291, 4294901760
    %293 = vmatpush.msra.mxu0 %v292
    %v294 = vand.u32 %v55, 4294901760
    %v295 = vsub.f32 %v55, %v294
    %v296 = vand.u32 %v295, 4294901760
    %297 = vmatpush.msra.mxu0 %v296
    %v298 = vand.u32 %v54, 4294901760
    %v299 = vsub.f32 %v54, %v298
    %v300 = vand.u32 %v299, 4294901760
    %301 = vmatpush.msra.mxu0 %v300
    %v302 = vand.u32 %v53, 4294901760
    %v303 = vsub.f32 %v53, %v302
    %v304 = vand.u32 %v303, 4294901760
    %305 = vmatpush.msra.mxu0 %v304
    %v306 = vand.u32 %v52, 4294901760
    %v307 = vsub.f32 %v52, %v306
    %v308 = vand.u32 %v307, 4294901760
    %309 = vmatpush.msra.mxu0 %v308
    %v310 = vand.u32 %v51, 4294901760
    %v311 = vsub.f32 %v51, %v310
    %v312 = vand.u32 %v311, 4294901760
    %313 = vmatpush.msra.mxu0 %v312
    %v314 = vand.u32 %v50, 4294901760
    %v315 = vsub.f32 %v50, %v314
    %v316 = vand.u32 %v315, 4294901760
    %317 = vmatpush.msra.mxu0 %v316
    %v318 = vand.u32 %v49, 4294901760
    %v319 = vsub.f32 %v49, %v318
    %v320 = vand.u32 %v319, 4294901760
    %321 = vmatpush.msra.mxu0 %v320
    %v322 = vand.u32 %v48, 4294901760
    %v323 = vsub.f32 %v48, %v322
    %v324 = vand.u32 %v323, 4294901760
    %325 = vmatpush.msra.mxu0 %v324
    %v326 = vand.u32 %v47, 4294901760
    %v327 = vsub.f32 %v47, %v326
    %v328 = vand.u32 %v327, 4294901760
    %329 = vmatpush.msra.mxu0 %v328
    %v330 = vand.u32 %v46, 4294901760
    %v331 = vsub.f32 %v46, %v330
    %v332 = vand.u32 %v331, 4294901760
    %333 = vmatpush.msra.mxu0 %v332
    %v334 = vand.u32 %v65, 4294901760
    %335 = vmatmul.f32.gmra.mxu0 %v334
    %v336 = vpop.f32.mrf.mxu0
    %v337 = vadd.f32 %v277, %v336
    %338 = vdwg.mxu0
    %339 = vmatpush.msra.mxu0 0.0
    %340 = vmatpush.msra.mxu0 0.0
    %341 = vmatpush.msra.mxu0 0.0
    %v342 = vand.u32 %v69, 4294901760
    %343 = vmatpush.msra.mxu0 %v342
    %v344 = vand.u32 %v57, 4294901760
    %345 = vmatpush.msra.mxu0 %v344
    %v346 = vand.u32 %v56, 4294901760
    %347 = vmatpush.msra.mxu0 %v346
    %v348 = vand.u32 %v55, 4294901760
    %349 = vmatpush.msra.mxu0 %v348
    %v350 = vand.u32 %v54, 4294901760
    %351 = vmatpush.msra.mxu0 %v350
    %v352 = vand.u32 %v53, 4294901760
    %353 = vmatpush.msra.mxu0 %v352
    %v354 = vand.u32 %v52, 4294901760
    %355 = vmatpush.msra.mxu0 %v354
    %v356 = vand.u32 %v51, 4294901760
    %357 = vmatpush.msra.mxu0 %v356
    %v358 = vand.u32 %v50, 4294901760
    %359 = vmatpush.msra.mxu0 %v358
    %v360 = vand.u32 %v49, 4294901760
    %361 = vmatpush.msra.mxu0 %v360
    %v362 = vand.u32 %v48, 4294901760
    %363 = vmatpush.msra.mxu0 %v362
    %v364 = vand.u32 %v47, 4294901760
    %365 = vmatpush.msra.mxu0 %v364
    %v366 = vand.u32 %v46, 4294901760
    %367 = vmatpush.msra.mxu0 %v366
    %v368 = vand.u32 %v65, 4294901760
    %369 = vmatmul.f32.gmra.mxu0 %v368
    %v370 = vpop.f32.mrf.mxu0
    %v371 = vadd.f32 %v337, %v370
    %372 = vdwg.mxu0
    %373 = vst.msk [vmem:[#allocation7] sm:$0xff] %vm63, %v371
    // Predicated region
    $region22: #{autoencoder_x_folded.1} parent=1 // pred_check
      _
    $region23: #{autoencoder_x_folded.1} parent=1 // pred_check_branch
      %375 = sbr.rel (0) target = $region25
    $region24: #{autoencoder_x_folded.1} parent=1 // pred_region
      %377 = vsyncadd [#allocation4], 0
      %s379 = sshll.u32 [#allocation7], 4
      %s380 = int_to_ptr.vmem [resolvable:$true] %s379
      %s381 = sshll.u32 %s3, 4
      %s382 = int_to_ptr.hbm [resolvable:$true] %s381
      %384 = dma.vmem_to_hbm [thread:$0]  %s380, 128, %s382, [#allocation4]
    $region25: #{autoencoder_x_folded.1} parent=1 // pred_fallthru
      _
    // Predicated region
    $region26: #{autoencoder_x_folded.1} parent=1 // pred_check
      _
    $region27: #{autoencoder_x_folded.1} parent=1 // pred_check_branch
      %386 = sbr.rel (0) target = $region29
    $region28: #{autoencoder_x_folded.1} parent=1 // pred_region
      %388 = dma.done [#allocation4], 128
    $region29: #{autoencoder_x_folded.1} parent=1 // pred_fallthru
      _
    %389 = vsyncpa [#allocation3], 1
    %390 = vsyncpa [#allocation6], 1
    %391 = vsyncpa [#allocation4], 1

</llo_original>
